<compile_context>
chip_gen: v5e
topology: v5e:2x2
jax: 0.10.0
libtpu: 0.0.40
codegen_flags: <defaults>
</compile_context>

<pallas_src>
import jax
import jax.numpy as jnp
import numpy as np
from jax import lax
from jax.experimental import pallas as pl
from jax.experimental.pallas import tpu as pltpu

SPECIAL_SYMBOLS = 3  # undreamt data.py: SOS/EOS/UNK, 0 is padding


def word_ids(ids):
    return jnp.where(ids > SPECIAL_SYMBOLS, ids - SPECIAL_SYMBOLS, 0)


def special_ids(ids):
    return jnp.where(ids <= SPECIAL_SYMBOLS, ids, 0)


# ----------------------------------------------------------------------------
# Pallas GRU layer: all directions fused, whole time loop inside one grid step,
# both directions writing straight into one (T, B, D*H) output slab.
# ----------------------------------------------------------------------------
def gru_layer_pallas(x, h0_stack, dir_params, lengths_col, max_len_arr,
                     compute_dtype=jnp.float32):
    """x: (T,B,E) f32, h0_stack: (D,B,H) f32,
    dir_params: list of D tuples (W_ih^T (E,3H), W_hh^T (H,3H), b_ih (1,3H), b_hh (1,3H)),
    lengths_col: (B,1) int32, max_len_arr: (1,) int32 == max(lengths).
    Returns (layer_out (T,B,D*H) f32, h_fin (D,B,H) f32)."""
    T, B, _ = x.shape
    D, _, H = h0_stack.shape
    G = 3 * H
    OUT_W = D * H

    # Hoisted input projection: one tall matmul per direction feeding the kernel.
    # Explicit precision so production builds do not silently depend on the global flag.
    gi = jnp.stack([
        (jnp.einsum('tbe,eg->tbg', x, p[0],
                    precision=lax.Precision.HIGHEST) + p[2]).astype(compute_dtype)
        for p in dir_params])                                            # (D,T,B,3H)
    whh = jnp.stack([p[1] for p in dir_params]).astype(compute_dtype)    # (D,H,3H)
    bhh = jnp.stack([p[3] for p in dir_params]).astype(jnp.float32)      # (D,1,3H)

    def kernel(maxlen_smem, lens_ref, gi_ref, h0_ref, whh_ref, bhh_ref,
               out_ref, hfin_ref):
        dirn = pl.program_id(0)
        max_len = jnp.minimum(maxlen_smem[0], T)   # host-side max(lengths), clamped

        lens = lens_ref[...]          # (B, 1) int32
        whh_m = whh_ref[...]          # (H, 3H)
        bhh_v = bhh_ref[...]          # (1, 3H)

        # Zero only the tail rows t in [max_len, T); the main loop writes every
        # row below max_len (masked rows get explicit zeros there). Done once.
        @pl.when(dirn == 0)
        def _():
            def zero_row(t, c):
                out_ref[t] = jnp.zeros((B, OUT_W), jnp.float32)
                return c
            lax.fori_loop(max_len, T, zero_row, 0)

        # Hoisted direction select: t = t0 + dt * i.
        if D == 2:
            is_rev = dirn == 1        # direction 1 walks time backwards
            t0 = jnp.where(is_rev, max_len - 1, 0)
            dt = jnp.where(is_rev, -1, 1)
        else:
            t0, dt = 0, 1

        def write_row(t, val):
            # Direction d owns the static lane range [d*H, (d+1)*H) of the
            # grid-resident (T, B, D*H) output block (lane-aligned when H % 128 == 0).
            if D == 1:
                out_ref[t] = val
            else:
                @pl.when(dirn == 0)
                def _():
                    out_ref[t, :, 0:H] = val

                @pl.when(dirn == 1)
                def _():
                    out_ref[t, :, H:2 * H] = val

        def step(i, h):
            t = t0 + dt * i
            gi_t = gi_ref[t]                                      # (B, 3H)
            gh = jnp.dot(h.astype(compute_dtype), whh_m,
                         preferred_element_type=jnp.float32) + bhh_v
            r = jax.nn.sigmoid(gi_t[:, 0:H] + gh[:, 0:H])
            z = jax.nn.sigmoid(gi_t[:, H:2 * H] + gh[:, H:2 * H])
            n = jnp.tanh(gi_t[:, 2 * H:3 * H] + r * gh[:, 2 * H:3 * H])
            h_new = (1.0 - z) * n + z * h
            mask = t < lens                                       # (B, 1)
            write_row(t, jnp.where(mask, h_new, jnp.zeros_like(h_new)))
            return jnp.where(mask, h_new, h)

        hfin_ref[...] = lax.fori_loop(0, max_len, step, h0_ref[...])

    out, hfin = pl.pallas_call(
        kernel,
        out_shape=(jax.ShapeDtypeStruct((T, B, OUT_W), jnp.float32),
                   jax.ShapeDtypeStruct((D, B, H), jnp.float32)),
        grid_spec=pltpu.PrefetchScalarGridSpec(
            num_scalar_prefetch=1,          # max(lengths) -> SMEM
            grid=(D,),
            in_specs=[
                pl.BlockSpec((B, 1), lambda d, ml: (0, 0)),                 # lengths (mask)
                pl.BlockSpec((None, T, B, G), lambda d, ml: (d, 0, 0, 0)),  # precomputed gi
                pl.BlockSpec((None, B, H), lambda d, ml: (d, 0, 0)),        # h0
                pl.BlockSpec((None, H, G), lambda d, ml: (d, 0, 0)),        # W_hh^T
                pl.BlockSpec((None, 1, G), lambda d, ml: (d, 0, 0)),        # b_hh
            ],
            out_specs=(
                # single grid-resident output slab, both directions write into it
                pl.BlockSpec((T, B, OUT_W), lambda d, ml: (0, 0, 0)),
                pl.BlockSpec((None, B, H), lambda d, ml: (d, 0, 0)),        # final hidden
            ),
        ),
        compiler_params=pltpu.CompilerParams(
            # output block is revisited across the direction axis -> "arbitrary"
            dimension_semantics=("arbitrary",),
            vmem_limit_bytes=64 * 1024 * 1024),
    )(max_len_arr, lengths_col, gi, h0_stack, whh, bhh)

    return out, hfin


# ----------------------------------------------------------------------------
# Pure-JAX reference GRU (for correctness check)
# ----------------------------------------------------------------------------
def gru_layer_ref(x, h0, w_ih_t, w_hh_t, b_ih, b_hh, lengths_col, *, reverse):
    T, B, E = x.shape
    H = h0.shape[1]

    def step(h, inp):
        t, xt = inp
        gi = xt @ w_ih_t + b_ih
        gh = h @ w_hh_t + b_hh
        r = jax.nn.sigmoid(gi[:, :H] + gh[:, :H])
        z = jax.nn.sigmoid(gi[:, H:2 * H] + gh[:, H:2 * H])
        n = jnp.tanh(gi[:, 2 * H:] + r * gh[:, 2 * H:])
        h_new = (1.0 - z) * n + z * h
        mask = t < lengths_col
        return jnp.where(mask, h_new, h), jnp.where(mask, h_new, 0.0)

    if reverse:
        times = jnp.arange(T - 1, -1, -1)
        xs = x[::-1]
    else:
        times = jnp.arange(T)
        xs = x
    h_fin, outs = lax.scan(step, h0, (times, xs))
    if reverse:
        outs = outs[::-1]
    return outs, h_fin


# ----------------------------------------------------------------------------
# RNNEncoder forward (glue in plain JAX, recurrence in Pallas)
# ----------------------------------------------------------------------------
def rnn_encoder_forward(ids, lengths, word_emb_table, special_emb_table,
                        gru_params, hidden0, *, layers, bidirectional,
                        impl="pallas", compute_dtype=jnp.float32):
    """ids: (T,B) int32; lengths: (B,) int32; hidden0: (layers*dirs, B, Hdir)."""
    D = 2 if bidirectional else 1
    T, B = ids.shape
    lengths = lengths.astype(jnp.int32)
    lengths_col = lengths.reshape(B, 1)
    max_len_arr = jnp.max(lengths).reshape(1).astype(jnp.int32)

    # embedding lookup (glue, plain JAX gather)
    emb = word_emb_table[word_ids(ids)] + special_emb_table[special_ids(ids)]

    layer_input = emb
    finals = []
    for l in range(layers):
        params = [gru_params[(l, d)] for d in range(D)]
        h0_stack = hidden0[l * D:(l + 1) * D]
        if impl == "pallas":
            layer_out, hfin = gru_layer_pallas(layer_input, h0_stack, params,
                                               lengths_col, max_len_arr,
                                               compute_dtype=compute_dtype)
            finals.extend([hfin[d] for d in range(D)])
            layer_input = layer_out
        else:
            dir_outs = []
            for d in range(D):
                w_ih_t, w_hh_t, b_ih, b_hh = params[d]
                out, h_fin = gru_layer_ref(layer_input, h0_stack[d], w_ih_t, w_hh_t,
                                           b_ih, b_hh, lengths_col, reverse=(d == 1))
                dir_outs.append(out)
                finals.append(h_fin)
            layer_input = (jnp.concatenate(dir_outs, axis=-1)
                           if D == 2 else dir_outs[0])

    output = layer_input                       # (T, B, dirs*Hdir)
    hidden = jnp.stack(finals)                 # (layers*dirs, B, Hdir)
    if bidirectional:
        hidden = jnp.stack([jnp.concatenate([hidden[2 * i], hidden[2 * i + 1]], axis=1)
                            for i in range(layers)])          # (layers, B, hidden_size)
    return hidden, output


# ----------------------------------------------------------------------------
# Main
# ----------------------------------------------------------------------------
if __name__ == "__main__":
    # f32 "highest" only so the pure-JAX reference matmuls match the Pallas path
    # at 1e-5 tolerance; production should use the bf16 compute_dtype path instead.
    jax.config.update("jax_default_matmul_precision", "highest")

    T, B = 8, 4
    vocab_words = 20
    embedding_size = 16

    key = jax.random.PRNGKey(0)
    keys = iter(jax.random.split(key, 128))

    # embedding tables (padding_idx=0 -> zero row)
    word_table = jax.random.normal(next(keys), (vocab_words + 1, embedding_size),
                                   jnp.float32) * 0.1
    word_table = word_table.at[0].set(0.0)
    special_table = jax.random.normal(next(keys), (SPECIAL_SYMBOLS + 1, embedding_size),
                                      jnp.float32) * 0.1
    special_table = special_table.at[0].set(0.0)

    # inputs: (T, B) int ids, variable lengths, padding id 0 past length
    lengths = jnp.array([8, 5, 8, 3], dtype=jnp.int32)
    raw_ids = jax.random.randint(next(keys), (T, B), 1,
                                 SPECIAL_SYMBOLS + vocab_words + 1, jnp.int32)
    ids = jnp.where(jnp.arange(T)[:, None] < lengths[None, :], raw_ids, 0)

    def build_params(layers, directions, H):
        # PyTorch init: U(-1/sqrt(H), 1/sqrt(H)); gate order r,z,n
        k = 1.0 / np.sqrt(H)
        params = {}
        for l in range(layers):
            in_size = embedding_size if l == 0 else H * directions
            for d in range(directions):
                w_ih = jax.random.uniform(next(keys), (3 * H, in_size), jnp.float32, -k, k)
                w_hh = jax.random.uniform(next(keys), (3 * H, H), jnp.float32, -k, k)
                b_ih = jax.random.uniform(next(keys), (3 * H,), jnp.float32, -k, k)
                b_hh = jax.random.uniform(next(keys), (3 * H,), jnp.float32, -k, k)
                params[(l, d)] = (w_ih.T, w_hh.T,
                                  b_ih.reshape(1, -1), b_hh.reshape(1, -1))
        return params

    # two module configs: bidirectional 2-layer, and unidirectional 1-layer
    for (layers, bidirectional, hidden_size) in [(2, True, 32), (1, False, 32)]:
        directions = 2 if bidirectional else 1
        H = hidden_size // directions
        gru_params = build_params(layers, directions, H)
        hidden0 = jnp.zeros((layers * directions, B, H), jnp.float32)

        hid, out = rnn_encoder_forward(ids, lengths, word_table, special_table,
                                       gru_params, hidden0, layers=layers,
                                       bidirectional=bidirectional, impl="pallas")
        hid, out = jax.block_until_ready((hid, out))

        hid_r, out_r = rnn_encoder_forward(ids, lengths, word_table, special_table,
                                           gru_params, hidden0, layers=layers,
                                           bidirectional=bidirectional, impl="ref")

        assert hid.shape == (layers, B, hidden_size)
        assert out.shape == (T, B, hidden_size)
        np.testing.assert_allclose(np.asarray(hid), np.asarray(hid_r),
                                   rtol=1e-5, atol=1e-5)
        np.testing.assert_allclose(np.asarray(out), np.asarray(out_r),
                                   rtol=1e-5, atol=1e-5)

    print("KERNEL_OK")
</pallas_src>

<mosaic_0001>
module attributes {stable_mosaic.version = 11 : i64} {
  func.func @kernel(%arg0: i32, %arg1: memref<1xi32, #tpu.memory_space<smem>>, %arg2: memref<4x1xi32, #tpu.memory_space<vmem>>, %arg3: memref<1x8x4x48xf32, #tpu.memory_space<vmem>>, %arg4: memref<1x4x16xf32, #tpu.memory_space<vmem>>, %arg5: memref<1x16x48xf32, #tpu.memory_space<vmem>>, %arg6: memref<1x1x48xf32, #tpu.memory_space<vmem>>, %arg7: memref<8x4x32xf32, #tpu.memory_space<vmem>>, %arg8: memref<1x4x16xf32, #tpu.memory_space<vmem>>) attributes {dimension_semantics = [#tpu.dimension_semantics<arbitrary>], iteration_bounds = array<i64: 2>, scalar_prefetch = 1 : i64, scratch_operands = 0 : i64, tpu.core_type = #tpu.core_type<tc>, window_params = [{pipeline_mode = #tpu.pipeline_mode<synchronous>, transform_indices = @transform_0, window_bounds = array<i64: 4, 1>}, {transform_indices = @transform_1, window_bounds = array<i64: 1, 8, 4, 48>}, {transform_indices = @transform_2, window_bounds = array<i64: 1, 4, 16>}, {transform_indices = @transform_3, window_bounds = array<i64: 1, 16, 48>}, {transform_indices = @transform_4, window_bounds = array<i64: 1, 1, 48>}, {pipeline_mode = #tpu.pipeline_mode<synchronous>, transform_indices = @transform_5, window_bounds = array<i64: 8, 4, 32>}, {transform_indices = @transform_6, window_bounds = array<i64: 1, 4, 16>}]} {
    %c0 = arith.constant 0 : index
    %0 = memref.load %arg1[%c0] : memref<1xi32, #tpu.memory_space<smem>>
    %c8_i32 = arith.constant 8 : i32
    %1 = arith.minsi %0, %c8_i32 : i32
    %c0_0 = arith.constant 0 : index
    %c0_1 = arith.constant 0 : index
    %2 = vector.load %arg2[%c0_0, %c0_1] : memref<4x1xi32, #tpu.memory_space<vmem>>, vector<4x1xi32>
    %c0_2 = arith.constant 0 : index
    %c0_3 = arith.constant 0 : index
    %c0_4 = arith.constant 0 : index
    %3 = vector.load %arg5[%c0_2, %c0_3, %c0_4] : memref<1x16x48xf32, #tpu.memory_space<vmem>>, vector<1x16x48xf32>
    %4 = vector.shape_cast %3 : vector<1x16x48xf32> to vector<16x48xf32>
    %c0_5 = arith.constant 0 : index
    %c0_6 = arith.constant 0 : index
    %c0_7 = arith.constant 0 : index
    %5 = vector.load %arg6[%c0_5, %c0_6, %c0_7] : memref<1x1x48xf32, #tpu.memory_space<vmem>>, vector<1x1x48xf32>
    %6 = vector.shape_cast %5 : vector<1x1x48xf32> to vector<1x48xf32>
    %c0_i32 = arith.constant 0 : i32
    %7 = arith.cmpi eq, %arg0, %c0_i32 : i32
    %8 = arith.extui %7 : i1 to i32
    %c0_i32_8 = arith.constant 0 : i32
    %9 = arith.cmpi ne, %8, %c0_i32_8 : i32
    scf.if %9 {
      %c0_i32_20 = arith.constant 0 : i32
      %c8_i32_21 = arith.constant 8 : i32
      %22 = arith.subi %c8_i32_21, %1 : i32
      %23 = arith.addi %1, %22 : i32
      %c1_i32_22 = arith.constant 1 : i32
      scf.for %arg9 = %1 to %23 step %c1_i32_22  : i32 {
        %cst = arith.constant 0.000000e+00 : f32
        %24 = vector.broadcast %cst : f32 to vector<4x32xf32>
        %25 = arith.index_cast %arg9 : i32 to index
        %c0_23 = arith.constant 0 : index
        %c0_24 = arith.constant 0 : index
        %26 = vector.load %arg7[%25, %c0_23, %c0_24] : memref<8x4x32xf32, #tpu.memory_space<vmem>>, vector<1x4x32xf32>
        %27 = vector.shape_cast %26 : vector<1x4x32xf32> to vector<4x32xf32>
        %28 = vector.shape_cast %24 : vector<4x32xf32> to vector<1x4x32xf32>
        tpu.vector_store %arg7[%25, %c0_23, %c0_24], %28 {strides = array<i32>} : memref<8x4x32xf32, #tpu.memory_space<vmem>>, vector<1x4x32xf32>,
      }
    } else {
    }
    %c1_i32 = arith.constant 1 : i32
    %10 = arith.cmpi eq, %arg0, %c1_i32 : i32
    %c1_i32_9 = arith.constant 1 : i32
    %11 = arith.subi %1, %c1_i32_9 : i32
    %c0_i32_10 = arith.constant 0 : i32
    %12 = arith.select %10, %11, %c0_i32_10 : i32
    %c-1_i32 = arith.constant -1 : i32
    %c1_i32_11 = arith.constant 1 : i32
    %13 = arith.select %10, %c-1_i32, %c1_i32_11 : i32
    %c0_12 = arith.constant 0 : index
    %c0_13 = arith.constant 0 : index
    %c0_14 = arith.constant 0 : index
    %14 = vector.load %arg4[%c0_12, %c0_13, %c0_14] : memref<1x4x16xf32, #tpu.memory_space<vmem>>, vector<1x4x16xf32>
    %15 = vector.shape_cast %14 : vector<1x4x16xf32> to vector<4x16xf32>
    %c0_i32_15 = arith.constant 0 : i32
    %16 = arith.subi %1, %c0_i32_15 : i32
    %17 = arith.addi %c0_i32_15, %16 : i32
    %c1_i32_16 = arith.constant 1 : i32
    %18 = scf.for %arg9 = %c0_i32_15 to %17 step %c1_i32_16 iter_args(%arg10 = %15) -> (vector<4x16xf32>)  : i32 {
      %22 = arith.muli %13, %arg9 : i32
      %23 = arith.addi %12, %22 : i32
      %c0_20 = arith.constant 0 : index
      %24 = arith.index_cast %23 : i32 to index
      %c0_21 = arith.constant 0 : index
      %c0_22 = arith.constant 0 : index
      %25 = vector.load %arg3[%c0_20, %24, %c0_21, %c0_22] : memref<1x8x4x48xf32, #tpu.memory_space<vmem>>, vector<1x1x4x48xf32>
      %26 = vector.shape_cast %25 : vector<1x1x4x48xf32> to vector<4x48xf32>
      %cst = arith.constant dense<0.000000e+00> : vector<4x48xf32>
      %27 = tpu.matmul %arg10, %4, %cst {dimension_numbers = #tpu.dot_dimension_numbers<[1], [0], [0], [1], [0, 0, 1, 1], [], []>, precision = #tpu.contract_precision<fp32>} : vector<4x16xf32>, vector<16x48xf32>, vector<4x48xf32> -> vector<4x48xf32>
      %28 = vector.broadcast %6 : vector<1x48xf32> to vector<4x48xf32>
      %29 = arith.addf %27, %28 : vector<4x48xf32>
      %30 = vector.extract_strided_slice %26 {offsets = [0, 0], sizes = [4, 16], strides = [1, 1]} : vector<4x48xf32> to vector<4x16xf32>
      %31 = vector.extract_strided_slice %29 {offsets = [0, 0], sizes = [4, 16], strides = [1, 1]} : vector<4x48xf32> to vector<4x16xf32>
      %32 = arith.addf %30, %31 : vector<4x16xf32>
      %33 = arith.negf %32 : vector<4x16xf32>
      %34 = math.exp %33 : vector<4x16xf32>
      %cst_23 = arith.constant 1.000000e+00 : f32
      %35 = vector.broadcast %cst_23 : f32 to vector<4x16xf32>
      %36 = arith.addf %35, %34 : vector<4x16xf32>
      %37 = arith.divf %35, %36 : vector<4x16xf32>
      %38 = vector.extract_strided_slice %26 {offsets = [0, 16], sizes = [4, 16], strides = [1, 1]} : vector<4x48xf32> to vector<4x16xf32>
      %39 = vector.extract_strided_slice %29 {offsets = [0, 16], sizes = [4, 16], strides = [1, 1]} : vector<4x48xf32> to vector<4x16xf32>
      %40 = arith.addf %38, %39 : vector<4x16xf32>
      %41 = arith.negf %40 : vector<4x16xf32>
      %42 = math.exp %41 : vector<4x16xf32>
      %cst_24 = arith.constant 1.000000e+00 : f32
      %43 = vector.broadcast %cst_24 : f32 to vector<4x16xf32>
      %44 = arith.addf %43, %42 : vector<4x16xf32>
      %45 = arith.divf %43, %44 : vector<4x16xf32>
      %46 = vector.extract_strided_slice %26 {offsets = [0, 32], sizes = [4, 16], strides = [1, 1]} : vector<4x48xf32> to vector<4x16xf32>
      %47 = vector.extract_strided_slice %29 {offsets = [0, 32], sizes = [4, 16], strides = [1, 1]} : vector<4x48xf32> to vector<4x16xf32>
      %48 = arith.mulf %37, %47 : vector<4x16xf32>
      %49 = arith.addf %46, %48 : vector<4x16xf32>
      %50 = math.tanh %49 : vector<4x16xf32>
      %cst_25 = arith.constant 1.000000e+00 : f32
      %51 = vector.broadcast %cst_25 : f32 to vector<4x16xf32>
      %52 = arith.subf %51, %45 : vector<4x16xf32>
      %53 = arith.mulf %52, %50 : vector<4x16xf32>
      %54 = arith.mulf %45, %arg10 : vector<4x16xf32>
      %55 = arith.addf %53, %54 : vector<4x16xf32>
      %56 = vector.broadcast %23 : i32 to vector<4x1xi32>
      %57 = arith.cmpi slt, %56, %2 : vector<4x1xi32>
      %cst_26 = arith.constant 0.000000e+00 : f32
      %58 = vector.broadcast %cst_26 : f32 to vector<4x16xf32>
      %59 = vector.shape_cast %57 : vector<4x1xi1> to vector<4x1xi1>
      %60 = vector.broadcast %59 : vector<4x1xi1> to vector<4x16xi1>
      %61 = arith.select %60, %55, %58 : vector<4x16xi1>, vector<4x16xf32>
      %c0_i32_27 = arith.constant 0 : i32
      %62 = arith.cmpi eq, %arg0, %c0_i32_27 : i32
      %63 = arith.extui %62 : i1 to i32
      %c0_i32_28 = arith.constant 0 : i32
      %64 = arith.cmpi ne, %63, %c0_i32_28 : i32
      scf.if %64 {
        %71 = arith.index_cast %23 : i32 to index
        %c0_31 = arith.constant 0 : index
        %c0_32 = arith.constant 0 : index
        %72 = vector.load %arg7[%71, %c0_31, %c0_32] : memref<8x4x32xf32, #tpu.memory_space<vmem>>, vector<1x4x16xf32>
        %73 = vector.shape_cast %72 : vector<1x4x16xf32> to vector<4x16xf32>
        %74 = vector.shape_cast %61 : vector<4x16xf32> to vector<1x4x16xf32>
        tpu.vector_store %arg7[%71, %c0_31, %c0_32], %74 {strides = array<i32>} : memref<8x4x32xf32, #tpu.memory_space<vmem>>, vector<1x4x16xf32>,
      } else {
      }
      %c1_i32_29 = arith.constant 1 : i32
      %65 = arith.cmpi eq, %arg0, %c1_i32_29 : i32
      %66 = arith.extui %65 : i1 to i32
      %c0_i32_30 = arith.constant 0 : i32
      %67 = arith.cmpi ne, %66, %c0_i32_30 : i32
      scf.if %67 {
        %71 = arith.index_cast %23 : i32 to index
        %c0_31 = arith.constant 0 : index
        %c16 = arith.constant 16 : index
        %72 = vector.load %arg7[%71, %c0_31, %c16] : memref<8x4x32xf32, #tpu.memory_space<vmem>>, vector<1x4x16xf32>
        %73 = vector.shape_cast %72 : vector<1x4x16xf32> to vector<4x16xf32>
        %74 = vector.shape_cast %61 : vector<4x16xf32> to vector<1x4x16xf32>
        tpu.vector_store %arg7[%71, %c0_31, %c16], %74 {strides = array<i32>} : memref<8x4x32xf32, #tpu.memory_space<vmem>>, vector<1x4x16xf32>,
      } else {
      }
      %68 = vector.shape_cast %57 : vector<4x1xi1> to vector<4x1xi1>
      %69 = vector.broadcast %68 : vector<4x1xi1> to vector<4x16xi1>
      %70 = arith.select %69, %55, %arg10 : vector<4x16xi1>, vector<4x16xf32>
      scf.yield %70 : vector<4x16xf32>
    }
    %c0_17 = arith.constant 0 : index
    %c0_18 = arith.constant 0 : index
    %c0_19 = arith.constant 0 : index
    %19 = vector.load %arg8[%c0_17, %c0_18, %c0_19] : memref<1x4x16xf32, #tpu.memory_space<vmem>>, vector<1x4x16xf32>
    %20 = vector.shape_cast %19 : vector<1x4x16xf32> to vector<4x16xf32>
    %21 = vector.shape_cast %18 : vector<4x16xf32> to vector<1x4x16xf32>
    tpu.vector_store %arg8[%c0_17, %c0_18, %c0_19], %21 {strides = array<i32>} : memref<1x4x16xf32, #tpu.memory_space<vmem>>, vector<1x4x16xf32>,
    return
  }
  func.func @transform_0(%arg0: i32, %arg1: memref<1xi32, #tpu.memory_space<smem>>) -> (i32, i32) {
    %c0_i32 = arith.constant 0 : i32
    %c0_i32_0 = arith.constant 0 : i32
    %c0_i32_1 = arith.constant 0 : i32
    return %c0_i32, %c0_i32_0 : i32, i32
  }
  func.func @transform_1(%arg0: i32, %arg1: memref<1xi32, #tpu.memory_space<smem>>) -> (i32, i32, i32, i32) {
    %c0_i32 = arith.constant 0 : i32
    %c0_i32_0 = arith.constant 0 : i32
    %c0_i32_1 = arith.constant 0 : i32
    %c0_i32_2 = arith.constant 0 : i32
    return %arg0, %c0_i32, %c0_i32_0, %c0_i32_1 : i32, i32, i32, i32
  }
  func.func @transform_2(%arg0: i32, %arg1: memref<1xi32, #tpu.memory_space<smem>>) -> (i32, i32, i32) {
    %c0_i32 = arith.constant 0 : i32
    %c0_i32_0 = arith.constant 0 : i32
    %c0_i32_1 = arith.constant 0 : i32
    return %arg0, %c0_i32, %c0_i32_0 : i32, i32, i32
  }
  func.func @transform_3(%arg0: i32, %arg1: memref<1xi32, #tpu.memory_space<smem>>) -> (i32, i32, i32) {
    %c0_i32 = arith.constant 0 : i32
    %c0_i32_0 = arith.constant 0 : i32
    %c0_i32_1 = arith.constant 0 : i32
    return %arg0, %c0_i32, %c0_i32_0 : i32, i32, i32
  }
  func.func @transform_4(%arg0: i32, %arg1: memref<1xi32, #tpu.memory_space<smem>>) -> (i32, i32, i32) {
    %c0_i32 = arith.constant 0 : i32
    %c0_i32_0 = arith.constant 0 : i32
    %c0_i32_1 = arith.constant 0 : i32
    return %arg0, %c0_i32, %c0_i32_0 : i32, i32, i32
  }
  func.func @transform_5(%arg0: i32, %arg1: memref<1xi32, #tpu.memory_space<smem>>) -> (i32, i32, i32) {
    %c0_i32 = arith.constant 0 : i32
    %c0_i32_0 = arith.constant 0 : i32
    %c0_i32_1 = arith.constant 0 : i32
    %c0_i32_2 = arith.constant 0 : i32
    return %c0_i32, %c0_i32_0, %c0_i32_1 : i32, i32, i32
  }
  func.func @transform_6(%arg0: i32, %arg1: memref<1xi32, #tpu.memory_space<smem>>) -> (i32, i32, i32) {
    %c0_i32 = arith.constant 0 : i32
    %c0_i32_0 = arith.constant 0 : i32
    %c0_i32_1 = arith.constant 0 : i32
    return %arg0, %c0_i32, %c0_i32_0 : i32, i32, i32
  }
}

</mosaic_0001>

<llo_original>
// kernel: tpu_custom_call.1
$region0: #{tpu_custom_call.1}
  #allocation0 [shape = 'u32[]', space=smem, size = 0x4, offset = 0x4, fixed_abs, tag = 'smem constant byte address 0x4 - core index']
  #allocation1 [shape = 'u32[72,128]{1,0:T(1,128)}', space=vmem, size = 0x9000, scoped, tag = 'internal scratch']
  #allocation2 [shape = 's32[1]{0}', space=sflag, size = 0x4, scoped, tag = 'scoped memory for tpu_custom_call.1']
  #allocation3 [shape = 's32[1]{0:T(128)S(6)}', space=smem, size = 0x200, scoped, tag = 'prefetched SMEM operand 0']
  %s0 = inlined_call_operand.<no memory space> [shape: s32[1], index: 0, kind: input, shape index: {}]
  %s1 = inlined_call_operand.vmem [shape: s32[4,1], index: 1, kind: input, shape index: {}]
  %s2 = inlined_call_operand.hbm [shape: f32[2,8,4,48], index: 2, kind: input, shape index: {}]
  %s3 = inlined_call_operand.hbm [shape: f32[2,4,16], index: 3, kind: input, shape index: {}]
  %s4 = inlined_call_operand.hbm [shape: f32[2,16,48], index: 4, kind: input, shape index: {}]
  %s5 = inlined_call_operand.vmem [shape: f32[2,1,48], index: 5, kind: input, shape index: {}]
  %s6 = inlined_call_operand.hbm [shape: f32[8,4,32], index: 6, kind: output, shape index: {0}]
  %s7 = inlined_call_operand.hbm [shape: f32[2,4,16], index: 7, kind: output, shape index: {1}]
  %8 = xla_tuple %s6, %s7
  %s9 = sld [smem:[#allocation0]]
  $region99: #{tpu_custom_call.1} parent=0
    _
  %s11 = ssub.s32 1, %s9
  %s12 = scalar_select 0, %s11, %s9
  %13 = sst [smem:[#allocation3]] %s0
  $region1: #{tpu_custom_call.1} parent=0
    #allocation4 [shape = 'u8[32768]{0}', space=vmem, size = 0x8000, scoped, tag = 'input window, operand 2']
    #allocation5 [shape = 's32[2]{0}', space=sflag, size = 0x8, scoped, tag = 'scoped memory for tpu_custom_call.1']
    #allocation6 [shape = 's32[2]{0}', space=sflag, size = 0x8, scoped, tag = 'scoped memory for tpu_custom_call.1']
    #allocation7 [shape = 'u8[4096]{0}', space=vmem, size = 0x1000, scoped, tag = 'input window, operand 3']
    #allocation8 [shape = 's32[2]{0}', space=sflag, size = 0x8, scoped, tag = 'scoped memory for tpu_custom_call.1']
    #allocation9 [shape = 'u8[16384]{0}', space=vmem, size = 0x4000, scoped, tag = 'input window, operand 4']
    #allocation10 [shape = 'u8[16384]{0}', space=vmem, size = 0x4000, scoped, tag = 'output window, operand 0, single buffered']
    #allocation11 [shape = 'u8[4096]{0}', space=vmem, size = 0x1000, scoped, tag = 'output window, operand 1']
    #allocation12 [shape = 's32[2]{0}', space=sflag, size = 0x8, scoped, tag = 'scoped memory for tpu_custom_call.1']
    %14 = vsyncpa [#allocation5], 0
    %s15 = scalar_lea.sflag [#allocation5], 1
    %16 = vsyncpa %s15, 0
    %17 = vsyncpa [#allocation8], 0
    %s18 = scalar_lea.sflag [#allocation8], 1
    %19 = vsyncpa %s18, 0
    %20 = vsyncpa [#allocation6], 0
    %21 = vsyncpa [#allocation12], 0
    %s22 = scalar_lea.sflag [#allocation12], 1
    %23 = vsyncpa %s22, 0
    loop: start=0, step=1, limit=4
    $region2: #{tpu_custom_call.1} parent=1 // loop_pre_header
      _
    $region3: #{tpu_custom_call.1} parent=1 // loop_header
      %s25 = sphi 0, %s29
      %p26 = scmp.ge.s32.totalorder %s25, 4
      %s33 = sphi 0, %s33
      %s35 = sphi 0, %s33
      %s36 = sphi 0, %s35
      %s50 = sphi 0, %s36
      %s56 = sphi 0, %s58
      %s59 = sphi 0, %s56
      %s60 = sphi 0, %s59
      %s76 = sphi 0, %s60
      %s82 = sphi 0, %s84
      %s85 = sphi 0, %s82
      %s86 = sphi 0, %s85
      %s102 = sphi 0, %s86
      %s108 = sphi 0, %s110
      %s111 = sphi 0, %s108
      %s112 = sphi 0, %s111
      %s128 = sphi 0, %s112
      %s134 = sphi 0, %s136
      %s137 = sphi 0, %s134
      %s138 = sphi 0, %s137
      %s154 = sphi 0, %s138
      %s158 = sphi 0, %s158
      %s160 = sphi 0, %s158
      %s161 = sphi 0, %s160
      %s175 = sphi 0, %s161
      %s181 = sphi 0, %s183
      %s184 = sphi 0, %s181
      %s185 = sphi 0, %s184
      %s201 = sphi 0, %s185
    $region4: #{tpu_custom_call.1} parent=1 // loop_header_branch
      %28 = sbr.rel (%p26) target = $region8
    $region5: #{tpu_custom_call.1} parent=1 // loop_body
      %s30 = ssub.s32 %s25, 1
      %s31 = ssub.s32 %s25, 2
      %s32 = sadd.s32 %s25, 1
      %s34 = sadd.s32 %s33, 1
      %p37 = scmp.eq.s32.totalorder %s25, 1
      %p38 = scmp.ne.s32.totalorder %s33, %s35
      %p39 = scmp.eq.s32.totalorder %s25, 0
      %p40 = por %p38, %p39
      %p41 = scmp.ne.s32.totalorder %s33, %s35
      %p42 = scmp.eq.s32.totalorder %s30, 1
      %p43 = por %p41, %p42
      %p44 = scmp.ne.s32.totalorder %s35, %s36
      %p45 = scmp.eq.s32.totalorder %s30, 0
      %p46 = por %p44, %p45
      %p47 = scmp.ne.s32.totalorder %s35, %s36
      %p48 = scmp.eq.s32.totalorder %s31, 1
      %p49 = por %p47, %p48
      %p51 = scmp.ne.s32.totalorder %s36, %s50
      %p52 = scmp.eq.s32.totalorder %s31, 0
      %p53 = por %p51, %p52
      %s54 = ssub.s32 %s25, %s32
      %p55 = scmp.eq.s32.totalorder %s54, 0
      %s57 = sadd.s32 %s56, 1
      %s58 = scalar_select %p55, %s56, %s57
      %p61 = pneg %p55
      %p62 = scmp.eq.s32.totalorder %s25, 1
      %p63 = por %p61, %p62
      %p64 = scmp.ne.s32.totalorder %s56, %s59
      %p65 = scmp.eq.s32.totalorder %s25, 0
      %p66 = por %p64, %p65
      %p67 = scmp.ne.s32.totalorder %s56, %s59
      %p68 = scmp.eq.s32.totalorder %s30, 1
      %p69 = por %p67, %p68
      %p70 = scmp.ne.s32.totalorder %s59, %s60
      %p71 = scmp.eq.s32.totalorder %s30, 0
      %p72 = por %p70, %p71
      %p73 = scmp.ne.s32.totalorder %s59, %s60
      %p74 = scmp.eq.s32.totalorder %s31, 1
      %p75 = por %p73, %p74
      %p77 = scmp.ne.s32.totalorder %s60, %s76
      %p78 = scmp.eq.s32.totalorder %s31, 0
      %p79 = por %p77, %p78
      %s80 = ssub.s32 %s25, %s32
      %p81 = scmp.eq.s32.totalorder %s80, 0
      %s83 = sadd.s32 %s82, 1
      %s84 = scalar_select %p81, %s82, %s83
      %p87 = pneg %p81
      %p88 = scmp.eq.s32.totalorder %s25, 1
      %p89 = por %p87, %p88
      %p90 = scmp.ne.s32.totalorder %s82, %s85
      %p91 = scmp.eq.s32.totalorder %s25, 0
      %p92 = por %p90, %p91
      %p93 = scmp.ne.s32.totalorder %s82, %s85
      %p94 = scmp.eq.s32.totalorder %s30, 1
      %p95 = por %p93, %p94
      %p96 = scmp.ne.s32.totalorder %s85, %s86
      %p97 = scmp.eq.s32.totalorder %s30, 0
      %p98 = por %p96, %p97
      %p99 = scmp.ne.s32.totalorder %s85, %s86
      %p100 = scmp.eq.s32.totalorder %s31, 1
      %p101 = por %p99, %p100
      %p103 = scmp.ne.s32.totalorder %s86, %s102
      %p104 = scmp.eq.s32.totalorder %s31, 0
      %p105 = por %p103, %p104
      %s106 = ssub.s32 %s25, %s32
      %p107 = scmp.eq.s32.totalorder %s106, 0
      %s109 = sadd.s32 %s108, 1
      %s110 = scalar_select %p107, %s108, %s109
      %p113 = pneg %p107
      %p114 = scmp.eq.s32.totalorder %s25, 1
      %p115 = por %p113, %p114
      %p116 = scmp.ne.s32.totalorder %s108, %s111
      %p117 = scmp.eq.s32.totalorder %s25, 0
      %p118 = por %p116, %p117
      %p119 = scmp.ne.s32.totalorder %s108, %s111
      %p120 = scmp.eq.s32.totalorder %s30, 1
      %p121 = por %p119, %p120
      %p122 = scmp.ne.s32.totalorder %s111, %s112
      %p123 = scmp.eq.s32.totalorder %s30, 0
      %p124 = por %p122, %p123
      %p125 = scmp.ne.s32.totalorder %s111, %s112
      %p126 = scmp.eq.s32.totalorder %s31, 1
      %p127 = por %p125, %p126
      %p129 = scmp.ne.s32.totalorder %s112, %s128
      %p130 = scmp.eq.s32.totalorder %s31, 0
      %p131 = por %p129, %p130
      %s132 = ssub.s32 %s25, %s32
      %p133 = scmp.eq.s32.totalorder %s132, 0
      %s135 = sadd.s32 %s134, 1
      %s136 = scalar_select %p133, %s134, %s135
      %p139 = pneg %p133
      %p140 = scmp.eq.s32.totalorder %s25, 1
      %p141 = por %p139, %p140
      %p142 = scmp.ne.s32.totalorder %s134, %s137
      %p143 = scmp.eq.s32.totalorder %s25, 0
      %p144 = por %p142, %p143
      %p145 = scmp.ne.s32.totalorder %s134, %s137
      %p146 = scmp.eq.s32.totalorder %s30, 1
      %p147 = por %p145, %p146
      %p148 = scmp.ne.s32.totalorder %s137, %s138
      %p149 = scmp.eq.s32.totalorder %s30, 0
      %p150 = por %p148, %p149
      %p151 = scmp.ne.s32.totalorder %s137, %s138
      %p152 = scmp.eq.s32.totalorder %s31, 1
      %p153 = por %p151, %p152
      %p155 = scmp.ne.s32.totalorder %s138, %s154
      %p156 = scmp.eq.s32.totalorder %s31, 0
      %p157 = por %p155, %p156
      %s159 = sadd.s32 %s158, 1
      %p162 = scmp.eq.s32.totalorder %s25, 1
      %p163 = scmp.ne.s32.totalorder %s158, %s160
      %p164 = scmp.eq.s32.totalorder %s25, 0
      %p165 = por %p163, %p164
      %p166 = scmp.ne.s32.totalorder %s158, %s160
      %p167 = scmp.eq.s32.totalorder %s30, 1
      %p168 = por %p166, %p167
      %p169 = scmp.ne.s32.totalorder %s160, %s161
      %p170 = scmp.eq.s32.totalorder %s30, 0
      %p171 = por %p169, %p170
      %p172 = scmp.ne.s32.totalorder %s160, %s161
      %p173 = scmp.eq.s32.totalorder %s31, 1
      %p174 = por %p172, %p173
      %p176 = scmp.ne.s32.totalorder %s161, %s175
      %p177 = scmp.eq.s32.totalorder %s31, 0
      %p178 = por %p176, %p177
      %s179 = ssub.s32 %s25, %s32
      %p180 = scmp.eq.s32.totalorder %s179, 0
      %s182 = sadd.s32 %s181, 1
      %s183 = scalar_select %p180, %s181, %s182
      %p186 = pneg %p180
      %p187 = scmp.eq.s32.totalorder %s25, 1
      %p188 = por %p186, %p187
      %p189 = scmp.ne.s32.totalorder %s181, %s184
      %p190 = scmp.eq.s32.totalorder %s25, 0
      %p191 = por %p189, %p190
      %p192 = scmp.ne.s32.totalorder %s181, %s184
      %p193 = scmp.eq.s32.totalorder %s30, 1
      %p194 = por %p192, %p193
      %p195 = scmp.ne.s32.totalorder %s184, %s185
      %p196 = scmp.eq.s32.totalorder %s30, 0
      %p197 = por %p195, %p196
      %p198 = scmp.ne.s32.totalorder %s184, %s185
      %p199 = scmp.eq.s32.totalorder %s31, 1
      %p200 = por %p198, %p199
      %p202 = scmp.ne.s32.totalorder %s185, %s201
      %p203 = scmp.eq.s32.totalorder %s31, 0
      %p204 = por %p202, %p203
      %p205 = scmp.le.s32.totalorder 1, %s25
      %p206 = scmp.lt.s32.totalorder %s25, 3
      %p207 = pnand %p205, %p206
      %p208 = pneg %p207
      // Predicated region
      $region9: #{tpu_custom_call.1} parent=5 // pred_check
        _
      $region10: #{tpu_custom_call.1} parent=5 // pred_check_branch
        %210 = sbr.rel (%p207) target = $region12
      $region11: #{tpu_custom_call.1} parent=5 // pred_region
        %s211 = ssub.s32 %s25, 1
        // Predicated region
        $region13: #{tpu_custom_call.1} parent=11 // pred_check
          %p212 = pneg %p46
        $region14: #{tpu_custom_call.1} parent=11 // pred_check_branch
          %214 = sbr.rel (%p212) target = $region16
        $region15: #{tpu_custom_call.1} parent=11 // pred_region
          _
        $region16: #{tpu_custom_call.1} parent=11 // pred_fallthru
          _
      $region12: #{tpu_custom_call.1} parent=5 // pred_fallthru
        _
      %p215 = scmp.lt.s32.totalorder %s25, 2
      // Predicated region
      $region17: #{tpu_custom_call.1} parent=5 // pred_check
        %p216 = pneg %p215
      $region18: #{tpu_custom_call.1} parent=5 // pred_check_branch
        %218 = sbr.rel (%p216) target = $region20
      $region19: #{tpu_custom_call.1} parent=5 // pred_region
        // Predicated region
        $region21: #{tpu_custom_call.1} parent=19 // pred_check
          %p219 = pneg %p66
        $region22: #{tpu_custom_call.1} parent=19 // pred_check_branch
          %221 = sbr.rel (%p219) target = $region24
        $region23: #{tpu_custom_call.1} parent=19 // pred_region
          %s222 = sand.u32 %s56, 1
          %s223 = scalar_lea.sflag [#allocation5], %s222
          %s224 = sand.u32 %s56, 1
          %s225 = smul.addr %s224, 32
          %s226 = scalar_lea.vmem [#allocation4], %s225
          %228 = vsyncadd %s223, 0
          %s229 = smul.addr %s25, 8
          %s230 = smul.addr %s229, 4
          %s231 = scalar_lea.hbm %s2, %s230
          %s232 = sshll.u32 %s231, 4
          %s233 = int_to_ptr.hbm [resolvable:$true] %s232
          %s234 = sshll.u32 %s226, 4
          %s235 = int_to_ptr.vmem [resolvable:$true] %s234
          %240 = dma.hbm_to_vmem [thread:$0]  %s233, 512, %s235, %s223, 64, 64, 4
        $region24: #{tpu_custom_call.1} parent=19 // pred_fallthru
          _
        // Predicated region
        $region25: #{tpu_custom_call.1} parent=19 // pred_check
          %p241 = pneg %p92
        $region26: #{tpu_custom_call.1} parent=19 // pred_check_branch
          %243 = sbr.rel (%p241) target = $region28
        $region27: #{tpu_custom_call.1} parent=19 // pred_region
          %s244 = sand.u32 %s25, 1
          %s245 = scalar_lea.sflag [#allocation8], %s244
          %s246 = sand.u32 %s82, 1
          %s247 = smul.addr %s246, 4
          %s248 = scalar_lea.vmem [#allocation7], %s247
          %250 = vsyncadd %s245, 0
          %s251 = smul.addr %s25, 4
          %s252 = scalar_lea.hbm %s3, %s251
          %s254 = sshll.u32 %s252, 4
          %s255 = int_to_ptr.hbm [resolvable:$true] %s254
          %s256 = sshll.u32 %s248, 4
          %s257 = int_to_ptr.vmem [resolvable:$true] %s256
          %259 = dma.hbm_to_vmem [thread:$0]  %s255, 64, %s257, %s245
        $region28: #{tpu_custom_call.1} parent=19 // pred_fallthru
          _
        // Predicated region
        $region29: #{tpu_custom_call.1} parent=19 // pred_check
          %p260 = pneg %p118
        $region30: #{tpu_custom_call.1} parent=19 // pred_check_branch
          %262 = sbr.rel (%p260) target = $region32
        $region31: #{tpu_custom_call.1} parent=19 // pred_region
          %s263 = sand.u32 %s25, 1
          %s264 = scalar_lea.sflag [#allocation8], %s263
          %s265 = sand.u32 %s108, 1
          %s266 = smul.addr %s265, 16
          %s267 = scalar_lea.vmem [#allocation9], %s266
          %269 = vsyncadd %s264, 0
          %s270 = smul.addr %s25, 2
          %s271 = smul.addr %s270, 8
          %s272 = scalar_lea.hbm %s4, %s271
          %s273 = sshll.u32 %s272, 4
          %s274 = int_to_ptr.hbm [resolvable:$true] %s273
          %s275 = sshll.u32 %s267, 4
          %s276 = int_to_ptr.vmem [resolvable:$true] %s275
          %281 = dma.hbm_to_vmem [thread:$0]  %s274, 256, %s276, %s264, 128, 128, 8
        $region32: #{tpu_custom_call.1} parent=19 // pred_fallthru
          _
        // Predicated region
        $region33: #{tpu_custom_call.1} parent=19 // pred_check
          %p282 = pneg %p144
        $region34: #{tpu_custom_call.1} parent=19 // pred_check_branch
          %284 = sbr.rel (%p282) target = $region36
        $region35: #{tpu_custom_call.1} parent=19 // pred_region
          %p285 = scmp.lt.s32.totalorder %s25, 1
          %s286 = scalar_select %p285, %s25, 1
          %s287 = scalar_lea.vmem %s5, %s286
        $region36: #{tpu_custom_call.1} parent=19 // pred_fallthru
          _
      $region20: #{tpu_custom_call.1} parent=5 // pred_fallthru
        _
      %p288 = scmp.le.s32.totalorder 1, %s25
      %p289 = scmp.lt.s32.totalorder %s25, 3
      %p290 = pnand %p288, %p289
      %p291 = pneg %p290
      // Predicated region
      $region37: #{tpu_custom_call.1} parent=5 // pred_check
        _
      $region38: #{tpu_custom_call.1} parent=5 // pred_check_branch
        %293 = sbr.rel (%p290) target = $region40
      $region39: #{tpu_custom_call.1} parent=5 // pred_region
        %s294 = ssub.s32 %s25, 1
        %s295 = sand.u32 %s59, 1
        %s296 = scalar_lea.sflag [#allocation5], %s295
        %s297 = sand.u32 %s59, 1
        %s298 = smul.addr %s297, 32
        %s299 = scalar_lea.vmem [#allocation4], %s298
        // Predicated region
        $region41: #{tpu_custom_call.1} parent=39 // pred_check
          %p300 = pneg %p72
        $region42: #{tpu_custom_call.1} parent=39 // pred_check_branch
          %302 = sbr.rel (%p300) target = $region44
        $region43: #{tpu_custom_call.1} parent=39 // pred_region
          %304 = dma.done %s296, 512
        $region44: #{tpu_custom_call.1} parent=39 // pred_fallthru
          _
        %s305 = sand.u32 %s30, 1
        %s306 = scalar_lea.sflag [#allocation8], %s305
        %s307 = sand.u32 %s85, 1
        %s308 = smul.addr %s307, 4
        %s309 = scalar_lea.vmem [#allocation7], %s308
        // Predicated region
        $region45: #{tpu_custom_call.1} parent=39 // pred_check
          %p310 = pneg %p98
        $region46: #{tpu_custom_call.1} parent=39 // pred_check_branch
          %312 = sbr.rel (%p310) target = $region48
        $region47: #{tpu_custom_call.1} parent=39 // pred_region
          %314 = dma.done %s306, 64
        $region48: #{tpu_custom_call.1} parent=39 // pred_fallthru
          _
        %s315 = sand.u32 %s30, 1
        %s316 = scalar_lea.sflag [#allocation8], %s315
        %s317 = sand.u32 %s111, 1
        %s318 = smul.addr %s317, 16
        %s319 = scalar_lea.vmem [#allocation9], %s318
        // Predicated region
        $region49: #{tpu_custom_call.1} parent=39 // pred_check
          %p320 = pneg %p124
        $region50: #{tpu_custom_call.1} parent=39 // pred_check_branch
          %322 = sbr.rel (%p320) target = $region52
        $region51: #{tpu_custom_call.1} parent=39 // pred_region
          %324 = dma.done %s316, 256
        $region52: #{tpu_custom_call.1} parent=39 // pred_fallthru
          _
        %p325 = pneg %p46
        %p326 = pneg %p43
        %s327 = sand.u32 %s59, 1
        %s328 = scalar_lea.sflag [#allocation5], %s327
        %s329 = sand.u32 %s59, 1
        %s330 = smul.addr %s329, 32
        %s331 = scalar_lea.vmem [#allocation4], %s330
        %p332 = pneg %p72
        %p333 = pneg %p69
        %s334 = sand.u32 %s30, 1
        %s335 = scalar_lea.sflag [#allocation8], %s334
        %s336 = sand.u32 %s85, 1
        %s337 = smul.addr %s336, 4
        %s338 = scalar_lea.vmem [#allocation7], %s337
        %p339 = pneg %p98
        %p340 = pneg %p95
        %s341 = sand.u32 %s30, 1
        %s342 = scalar_lea.sflag [#allocation8], %s341
        %s343 = sand.u32 %s111, 1
        %s344 = smul.addr %s343, 16
        %s345 = scalar_lea.vmem [#allocation9], %s344
        %p346 = pneg %p124
        %p347 = pneg %p121
        %p348 = scmp.lt.s32.totalorder %s30, 1
        %s349 = scalar_select %p348, %s30, 1
        %s350 = scalar_lea.vmem %s5, %s349
        %p351 = pneg %p150
        %p352 = pneg %p147
        %p353 = pneg %p171
        %p354 = pneg %p168
        %p355 = pneg %p197
        %p356 = pneg %p194
        %s357 = sand.u32 %s184, 1
        %s358 = scalar_lea.sflag [#allocation12], %s357
        %s359 = sand.u32 %s184, 1
        %s360 = smul.addr %s359, 4
        %s361 = scalar_lea.vmem [#allocation11], %s360
        %p362 = scmp.lt.s32.totalorder %s30, 1
        %s363 = scalar_select %p362, %s30, 1
        %s364 = scalar_lea.vmem %s5, %s363
        %s365 = sld [smem:[#allocation3]]
        %p366 = scmp.lt.s32.totalorder %s365, 8
        %s367 = scalar_select %p366, %s365, 8
        %v368 = vld [vmem:[%s1] sm:$0xf]
        %v369 = vld [vmem:[%s319] sm:$0xff]
        %v370 = vld [vmem:[%s319 + $0x8] sm:$0xff]
        %v371 = vld [vmem:[%s364] sm:$0x1]
        %p372 = scmp.eq.s32.totalorder %s30, 0
        // Predicated region
        $region53: #{tpu_custom_call.1} parent=39 // pred_check
          %p373 = pneg %p372
        $region54: #{tpu_custom_call.1} parent=39 // pred_check_branch
          %375 = sbr.rel (%p373) target = $region56
        $region55: #{tpu_custom_call.1} parent=39 // pred_region
          // While loop
          $region57: #{tpu_custom_call.1} parent=55 // loop_pre_header
            _
          $region58: #{tpu_custom_call.1} parent=55 // loop_header
            %s377 = sphi %s367, %s379
            %p378 = scmp.ge.s32.totalorder %s377, 8
          $region59: #{tpu_custom_call.1} parent=55 // loop_header_branch
            %381 = sbr.rel (%p378) target = $region63
          $region60: #{tpu_custom_call.1} parent=55 // loop_body
            %s382 = smul.u32 %s377, 4
            %s383 = scalar_lea.vmem [#allocation10], %s382
            %vm384 = vcmask 257024
            %385 = vst.msk [vmem:[%s383] sm:$0xf] %vm384, 0.0
          $region61: #{tpu_custom_call.1} parent=55 // loop_footer
            %s379 = sadd.s32 %s377, 1
          $region62: #{tpu_custom_call.1} parent=55 // loop_footer_branch
            %376 = sbr.rel target = $region58
          $region63: #{tpu_custom_call.1} parent=55 // loop_exit
            _
        $region56: #{tpu_custom_call.1} parent=39 // pred_fallthru
          _
        %p386 = scmp.eq.s32.totalorder %s30, 1
        %s387 = ssub.s32 %s367, 1
        %s388 = scalar_select %p386, %s387, 0
        %s389 = scalar_select %p386, 4294967295, 1
        %v390 = vld [vmem:[%s309] sm:$0xf]
        // While loop
        $region64: #{tpu_custom_call.1} parent=39 // loop_pre_header
          _
        $region65: #{tpu_custom_call.1} parent=39 // loop_header
          %s392 = sphi 0, %s394
          %p393 = scmp.ge.s32.totalorder %s392, %s367
          %v397 = vphi %v390, %v638
        $region66: #{tpu_custom_call.1} parent=39 // loop_header_branch
          %396 = sbr.rel (%p393) target = $region70
        $region67: #{tpu_custom_call.1} parent=39 // loop_body
          %s398 = smul.u32 %s389, %s392
          %s399 = sadd.s32 %s388, %s398
          %s400 = smul.u32 %s399, 4
          %s401 = scalar_lea.vmem %s299, %s400 [#allocation4]
          %v402 = vld [vmem:[%s401] sm:$0xf]
          %v404 = vperm.slane %v371, 0
          %vm406 = vcmask 130048
          %v408 = vsel %vm406, %v397, 0
          %410 = vmatpush.msra.mxu0 0.0
          %411 = vmatpush.msra.mxu0 0.0
          %412 = vmatpush.msra.mxu0 0.0
          %413 = vmatpush.msra.mxu0 0.0
          %414 = vmatpush.msra.mxu0 0.0
          %415 = vmatpush.msra.mxu0 0.0
          %416 = vmatpush.msra.mxu0 0.0
          %417 = vmatpush.msra.mxu0 0.0
          %418 = vmatpush.msra.mxu0 0.0
          %419 = vmatpush.msra.mxu0 0.0
          %420 = vmatpush.msra.mxu0 0.0
          %421 = vmatpush.msra.mxu0 0.0
          %422 = vmatpush.msra.mxu0 0.0
          %423 = vmatpush.msra.mxu0 0.0
          %v424 = vand.u32 %v370, 4294901760
          %425 = vmatpush.msra.mxu0 %v424
          %v426 = vand.u32 %v369, 4294901760
          %427 = vmatpush.msra.mxu0 %v426
          %v428 = vand.u32 %v408, 4294901760
          %v429 = vsub.f32 %v408, %v428
          %v430 = vand.u32 %v429, 4294901760
          %v431 = vsub.f32 %v429, %v430
          %v432 = vand.u32 %v431, 4294901760
          %433 = vmatmul.f32.gmra.mxu0 %v432
          %v434 = vpop.f32.mrf.mxu0
          %v435 = vadd.f32 %v404, %v434
          %436 = vdwg.mxu0
          %437 = vmatpush.msra.mxu0 0.0
          %438 = vmatpush.msra.mxu0 0.0
          %439 = vmatpush.msra.mxu0 0.0
          %440 = vmatpush.msra.mxu0 0.0
          %441 = vmatpush.msra.mxu0 0.0
          %442 = vmatpush.msra.mxu0 0.0
          %443 = vmatpush.msra.mxu0 0.0
          %444 = vmatpush.msra.mxu0 0.0
          %445 = vmatpush.msra.mxu0 0.0
          %446 = vmatpush.msra.mxu0 0.0
          %447 = vmatpush.msra.mxu0 0.0
          %448 = vmatpush.msra.mxu0 0.0
          %449 = vmatpush.msra.mxu0 0.0
          %450 = vmatpush.msra.mxu0 0.0
          %v451 = vand.u32 %v370, 4294901760
          %v452 = vsub.f32 %v370, %v451
          %v453 = vand.u32 %v452, 4294901760
          %v454 = vsub.f32 %v452, %v453
          %v455 = vand.u32 %v454, 4294901760
          %456 = vmatpush.msra.mxu0 %v455
          %v457 = vand.u32 %v369, 4294901760
          %v458 = vsub.f32 %v369, %v457
          %v459 = vand.u32 %v458, 4294901760
          %v460 = vsub.f32 %v458, %v459
          %v461 = vand.u32 %v460, 4294901760
          %462 = vmatpush.msra.mxu0 %v461
          %v463 = vand.u32 %v408, 4294901760
          %464 = vmatmul.f32.gmra.mxu0 %v463
          %v465 = vpop.f32.mrf.mxu0
          %v466 = vadd.f32 %v435, %v465
          %467 = vdwg.mxu0
          %468 = vmatpush.msra.mxu0 0.0
          %469 = vmatpush.msra.mxu0 0.0
          %470 = vmatpush.msra.mxu0 0.0
          %471 = vmatpush.msra.mxu0 0.0
          %472 = vmatpush.msra.mxu0 0.0
          %473 = vmatpush.msra.mxu0 0.0
          %474 = vmatpush.msra.mxu0 0.0
          %475 = vmatpush.msra.mxu0 0.0
          %476 = vmatpush.msra.mxu0 0.0
          %477 = vmatpush.msra.mxu0 0.0
          %478 = vmatpush.msra.mxu0 0.0
          %479 = vmatpush.msra.mxu0 0.0
          %480 = vmatpush.msra.mxu0 0.0
          %481 = vmatpush.msra.mxu0 0.0
          %v482 = vand.u32 %v370, 4294901760
          %v483 = vsub.f32 %v370, %v482
          %484 = vmatpush.msra.mxu0 %v483
          %v485 = vand.u32 %v369, 4294901760
          %v486 = vsub.f32 %v369, %v485
          %487 = vmatpush.msra.mxu0 %v486
          %v488 = vand.u32 %v408, 4294901760
          %v489 = vsub.f32 %v408, %v488
          %490 = vmatmul.f32.gmra.mxu0 %v489
          %v491 = vpop.f32.mrf.mxu0
          %v492 = vadd.f32 %v466, %v491
          %493 = vdwg.mxu0
          %494 = vmatpush.msra.mxu0 0.0
          %495 = vmatpush.msra.mxu0 0.0
          %496 = vmatpush.msra.mxu0 0.0
          %497 = vmatpush.msra.mxu0 0.0
          %498 = vmatpush.msra.mxu0 0.0
          %499 = vmatpush.msra.mxu0 0.0
          %500 = vmatpush.msra.mxu0 0.0
          %501 = vmatpush.msra.mxu0 0.0
          %502 = vmatpush.msra.mxu0 0.0
          %503 = vmatpush.msra.mxu0 0.0
          %504 = vmatpush.msra.mxu0 0.0
          %505 = vmatpush.msra.mxu0 0.0
          %506 = vmatpush.msra.mxu0 0.0
          %507 = vmatpush.msra.mxu0 0.0
          %v508 = vand.u32 %v370, 4294901760
          %509 = vmatpush.msra.mxu0 %v508
          %v510 = vand.u32 %v369, 4294901760
          %511 = vmatpush.msra.mxu0 %v510
          %v512 = vand.u32 %v408, 4294901760
          %v513 = vsub.f32 %v408, %v512
          %v514 = vand.u32 %v513, 4294901760
          %515 = vmatmul.f32.gmra.mxu0 %v514
          %v516 = vpop.f32.mrf.mxu0
          %v517 = vadd.f32 %v492, %v516
          %518 = vdwg.mxu0
          %519 = vmatpush.msra.mxu0 0.0
          %520 = vmatpush.msra.mxu0 0.0
          %521 = vmatpush.msra.mxu0 0.0
          %522 = vmatpush.msra.mxu0 0.0
          %523 = vmatpush.msra.mxu0 0.0
          %524 = vmatpush.msra.mxu0 0.0
          %525 = vmatpush.msra.mxu0 0.0
          %526 = vmatpush.msra.mxu0 0.0
          %527 = vmatpush.msra.mxu0 0.0
          %528 = vmatpush.msra.mxu0 0.0
          %529 = vmatpush.msra.mxu0 0.0
          %530 = vmatpush.msra.mxu0 0.0
          %531 = vmatpush.msra.mxu0 0.0
          %532 = vmatpush.msra.mxu0 0.0
          %v533 = vand.u32 %v370, 4294901760
          %v534 = vsub.f32 %v370, %v533
          %v535 = vand.u32 %v534, 4294901760
          %536 = vmatpush.msra.mxu0 %v535
          %v537 = vand.u32 %v369, 4294901760
          %v538 = vsub.f32 %v369, %v537
          %v539 = vand.u32 %v538, 4294901760
          %540 = vmatpush.msra.mxu0 %v539
          %v541 = vand.u32 %v408, 4294901760
          %542 = vmatmul.f32.gmra.mxu0 %v541
          %v543 = vpop.f32.mrf.mxu0
          %v544 = vadd.f32 %v517, %v543
          %545 = vdwg.mxu0
          %546 = vmatpush.msra.mxu0 0.0
          %547 = vmatpush.msra.mxu0 0.0
          %548 = vmatpush.msra.mxu0 0.0
          %549 = vmatpush.msra.mxu0 0.0
          %550 = vmatpush.msra.mxu0 0.0
          %551 = vmatpush.msra.mxu0 0.0
          %552 = vmatpush.msra.mxu0 0.0
          %553 = vmatpush.msra.mxu0 0.0
          %554 = vmatpush.msra.mxu0 0.0
          %555 = vmatpush.msra.mxu0 0.0
          %556 = vmatpush.msra.mxu0 0.0
          %557 = vmatpush.msra.mxu0 0.0
          %558 = vmatpush.msra.mxu0 0.0
          %559 = vmatpush.msra.mxu0 0.0
          %v560 = vand.u32 %v370, 4294901760
          %561 = vmatpush.msra.mxu0 %v560
          %v562 = vand.u32 %v369, 4294901760
          %563 = vmatpush.msra.mxu0 %v562
          %v564 = vand.u32 %v408, 4294901760
          %565 = vmatmul.f32.gmra.mxu0 %v564
          %v566 = vpop.f32.mrf.mxu0
          %v567 = vadd.f32 %v544, %v566
          %568 = vdwg.mxu0
          %v569 = vadd.f32 %v402, %v567
          %v570 = vxor.u32 %v569, 2147483648
          %v571 = vmul.f32 %v570, 1.442695
          %v572 = vpow.pop %v571
          %v573 = vadd.f32 %v572, 1.0
          %v574 = vrcp.pop %v573
          %v575 = vmul.f32 %v573, %v574
          %v576 = vsub.f32 1.0, %v575
          %v577 = vmul.f32 %v574, %v576
          %v578 = vadd.f32 %v574, %v577
          %vm579 = vweird.f32 %v573
          %vm580 = vweird.f32 %v574
          %vm581 = vmor %vm579, %vm580
          %v582 = vsel %vm581, %v574, %v578
          %v583 = vand.u32 2147483647, %v573
          %vm584 = vcmp.eq.f32.partialorder %v583, 8.507059e+37
          %v585 = vand.u32 %v573, 2147483648
          %v586 = vor.u32 1.1754944e-38, %v585
          %v587 = vsel %vm584, %v586, %v582
          %v588 = vmul.f32 1.0, %v587
          %590 = vrot.lane.b32.xlu0 %v567, 96
          %v591 = vpop.permute.xlu0 %590
          %v593 = vmul.f32 %v588, %v591
          %595 = vrot.lane.b32.xlu0 %v593, 32
          %v596 = vpop.permute.xlu0 %595
          %v598 = vadd.f32 %v402, %v596
          %v599 = vtanh.pop %v598
          %v600 = vsub.f32 1.0, %v588
          %602 = vrot.lane.b32.xlu0 %v599, 112
          %v603 = vpop.permute.xlu0 %602
          %v605 = vmul.f32 %v600, %v603
          %606 = vrot.lane.b32.xlu0 %v397, 16
          %v607 = vpop.permute.xlu0 %606
          %v609 = vmul.f32 %v588, %v607
          %v610 = vadd.f32 %v605, %v609
          %v611 = vstv %s399
          %vm612 = vcmp.lt.s32.totalorder %v611, %v368
          %v613 = vsel %vm612, 1, 0
          %614 = vset.pattern.permute.xlu0 0
          %615 = vperm.xlu0 %614, %v613
          %v616 = vpop.permute.xlu0 %615
          %vm617 = vcmp.eq.s32.totalorder %v616, 1
          %v618 = vsel %vm617, %v610, 0.0
          // Predicated region
          $region71: #{tpu_custom_call.1} parent=67 // pred_check
            %p619 = pneg %p372
          $region72: #{tpu_custom_call.1} parent=67 // pred_check_branch
            %621 = sbr.rel (%p619) target = $region74
          $region73: #{tpu_custom_call.1} parent=67 // pred_region
            %623 = vrot.lane.b32.xlu0 %v618, 112
            %v624 = vpop.permute.xlu0 %623
            %s626 = scalar_lea.vmem [#allocation10], %s400
            %vm627 = vcmask 125952
            %628 = vst.msk [vmem:[%s626] sm:$0xf] %vm627, %v624
          $region74: #{tpu_custom_call.1} parent=67 // pred_fallthru
            _
          // Predicated region
          $region75: #{tpu_custom_call.1} parent=67 // pred_check
            %p629 = pneg %p386
          $region76: #{tpu_custom_call.1} parent=67 // pred_check_branch
            %631 = sbr.rel (%p629) target = $region78
          $region77: #{tpu_custom_call.1} parent=67 // pred_region
            %s632 = scalar_lea.vmem [#allocation10], %s400
            %vm633 = vcmask 257152
            %634 = vst.msk [vmem:[%s632] sm:$0xf] %vm633, %v618
          $region78: #{tpu_custom_call.1} parent=67 // pred_fallthru
            _
          %v635 = vsel %vm617, %v610, %v607
          %637 = vrot.lane.b32.xlu0 %v635, 112
          %v638 = vpop.permute.xlu0 %637
        $region68: #{tpu_custom_call.1} parent=39 // loop_footer
          %s394 = sadd.s32 %s392, 1
        $region69: #{tpu_custom_call.1} parent=39 // loop_footer_branch
          %391 = sbr.rel target = $region65
        $region70: #{tpu_custom_call.1} parent=39 // loop_exit
          _
        %vm640 = vcmask 125952
        %641 = vst.msk [vmem:[%s361] sm:$0xf] %vm640, %v397
        %s642 = sand.u32 %s184, 1
        %s643 = scalar_lea.sflag [#allocation12], %s642
        %s644 = sand.u32 %s184, 1
        %s645 = smul.addr %s644, 4
        %s646 = scalar_lea.vmem [#allocation11], %s645
        // Predicated region
        $region79: #{tpu_custom_call.1} parent=39 // pred_check
          %p647 = pneg %p168
        $region80: #{tpu_custom_call.1} parent=39 // pred_check_branch
          %649 = sbr.rel (%p647) target = $region82
        $region81: #{tpu_custom_call.1} parent=39 // pred_region
          %651 = vsyncadd [#allocation6], 0
          %s652 = sshll.u32 [#allocation10], 4
          %s653 = int_to_ptr.vmem [resolvable:$true] %s652
          %s654 = sshll.u32 %s6, 4
          %s655 = int_to_ptr.hbm [resolvable:$true] %s654
          %660 = dma.vmem_to_hbm [thread:$0]  %s653, 512, %s655, [#allocation6], 64, 64, 4
        $region82: #{tpu_custom_call.1} parent=39 // pred_fallthru
          _
        // Predicated region
        $region83: #{tpu_custom_call.1} parent=39 // pred_check
          %p661 = pneg %p194
        $region84: #{tpu_custom_call.1} parent=39 // pred_check_branch
          %663 = sbr.rel (%p661) target = $region86
        $region85: #{tpu_custom_call.1} parent=39 // pred_region
          %665 = vsyncadd %s643, 0
          %s666 = smul.addr %s30, 4
          %s667 = scalar_lea.hbm %s7, %s666
          %s669 = sshll.u32 %s646, 4
          %s670 = int_to_ptr.vmem [resolvable:$true] %s669
          %s671 = sshll.u32 %s667, 4
          %s672 = int_to_ptr.hbm [resolvable:$true] %s671
          %674 = dma.vmem_to_hbm [thread:$0]  %s670, 64, %s672, %s643
        $region86: #{tpu_custom_call.1} parent=39 // pred_fallthru
          _
        // Predicated region
        $region87: #{tpu_custom_call.1} parent=39 // pred_check
          %p675 = pneg %p168
        $region88: #{tpu_custom_call.1} parent=39 // pred_check_branch
          %677 = sbr.rel (%p675) target = $region90
        $region89: #{tpu_custom_call.1} parent=39 // pred_region
          %679 = dma.done [#allocation6], 512
        $region90: #{tpu_custom_call.1} parent=39 // pred_fallthru
          _
      $region40: #{tpu_custom_call.1} parent=5 // pred_fallthru
        _
      %p680 = scmp.le.s32.totalorder 2, %s25
      // Predicated region
      $region91: #{tpu_custom_call.1} parent=5 // pred_check
        %p681 = pneg %p680
      $region92: #{tpu_custom_call.1} parent=5 // pred_check_branch
        %683 = sbr.rel (%p681) target = $region94
      $region93: #{tpu_custom_call.1} parent=5 // pred_region
        %s684 = ssub.s32 %s25, 2
        // Predicated region
        $region95: #{tpu_custom_call.1} parent=93 // pred_check
          %p685 = pneg %p200
        $region96: #{tpu_custom_call.1} parent=93 // pred_check_branch
          %687 = sbr.rel (%p685) target = $region98
        $region97: #{tpu_custom_call.1} parent=93 // pred_region
          %s688 = sand.u32 %s185, 1
          %s689 = scalar_lea.sflag [#allocation12], %s688
          %s690 = sand.u32 %s185, 1
          %s691 = smul.addr %s690, 4
          %s692 = scalar_lea.vmem [#allocation11], %s691
          %694 = dma.done %s689, 64
        $region98: #{tpu_custom_call.1} parent=93 // pred_fallthru
          _
      $region94: #{tpu_custom_call.1} parent=5 // pred_fallthru
        _
    $region6: #{tpu_custom_call.1} parent=1 // loop_footer
      %s29 = sadd.s32 1, %s25
    $region7: #{tpu_custom_call.1} parent=1 // loop_footer_branch
      %24 = sbr.rel target = $region3
    $region8: #{tpu_custom_call.1} parent=1 // loop_exit
      _
    %695 = vsyncpa [#allocation5], 1
    %s696 = scalar_lea.sflag [#allocation5], 1
    %697 = vsyncpa %s696, 1
    %698 = vsyncpa [#allocation8], 1
    %s699 = scalar_lea.sflag [#allocation8], 1
    %700 = vsyncpa %s699, 1
    %701 = vsyncpa [#allocation6], 1
    %s702 = scalar_lea.sflag [#allocation6], 1
    %703 = vsyncpa %s702, 1
    %704 = vsyncpa [#allocation12], 1
    %s705 = scalar_lea.sflag [#allocation12], 1
    %706 = vsyncpa %s705, 1

</llo_original>
